<compile_context>
chip_gen: v5e
topology: v5e:2x2
jax: 0.10.0
libtpu: 0.0.40
codegen_flags: <defaults>
</compile_context>

<pallas_src>
import functools

import jax
import jax.numpy as jnp
from jax.experimental import pallas as pl
from jax.experimental.pallas import tpu as pltpu


# ---------------------------------------------------------------------------
# Implementation 1: pure HBM->HBM strided DMA (no VMEM staging).
# ---------------------------------------------------------------------------
def _chomp1d_dma_kernel(x_hbm, o_hbm, sem):
    # x_hbm: (rows, L) in HBM, o_hbm: (rows, L_out) in HBM.
    # Copy the leading L_out lanes of every row directly HBM->HBM:
    # source row stride = L, transfer length per row = L_out.
    l_out = o_hbm.shape[-1]
    cp = pltpu.make_async_copy(x_hbm.at[:, pl.ds(0, l_out)], o_hbm, sem)
    cp.start()
    cp.wait()


def _chomp1d_dma(x2d, l_out):
    rows, _ = x2d.shape
    dtype_bytes = jnp.dtype(x2d.dtype).itemsize
    return pl.pallas_call(
        _chomp1d_dma_kernel,
        out_shape=jax.ShapeDtypeStruct((rows, l_out), x2d.dtype),
        in_specs=[pl.BlockSpec(memory_space=pl.ANY)],
        out_specs=pl.BlockSpec(memory_space=pl.ANY),
        scratch_shapes=[pltpu.SemaphoreType.DMA(())],
        cost_estimate=pl.CostEstimate(
            flops=0,
            transcendentals=0,
            bytes_accessed=2 * rows * l_out * dtype_bytes,
        ),
    )(x2d)


# ---------------------------------------------------------------------------
# Implementation 2: row-tiled VMEM-staged copy (fallback / fusion-friendly).
# ---------------------------------------------------------------------------
def _chomp1d_copy_kernel(x_ref, o_ref):
    # x_ref: (TR, L) in VMEM, o_ref: (TR, L_out) in VMEM.
    o_ref[...] = x_ref[:, : o_ref.shape[-1]]


def _row_tile(rows, l_in, l_out, dtype_bytes):
    """Largest row tile whose double-buffered in+out stays under ~16 MiB."""
    # Sublane packing: 8 rows for 4-byte, 16 for 2-byte, 32 for 1-byte dtypes.
    pack = 8 * max(1, 4 // dtype_bytes)
    budget = 16 * 1024 * 1024  # fits default scoped VMEM on v5e/v6e/v7x
    per_row = 2 * (l_in + l_out) * dtype_bytes  # double-buffered in + out
    tr = max(pack, (budget // max(per_row, 1)) // pack * pack)
    if tr >= rows:
        return rows  # single full-extent block (always a legal block shape)
    return tr  # multiple of `pack`; ragged last block is masked by Pallas


def _chomp1d_tiled(x2d, l_out):
    rows, l_in = x2d.shape
    dtype_bytes = jnp.dtype(x2d.dtype).itemsize
    tr = _row_tile(rows, l_in, l_out, dtype_bytes)
    return pl.pallas_call(
        _chomp1d_copy_kernel,
        out_shape=jax.ShapeDtypeStruct((rows, l_out), x2d.dtype),
        grid=(pl.cdiv(rows, tr),),
        in_specs=[pl.BlockSpec((tr, l_in), lambda i: (i, 0))],
        out_specs=pl.BlockSpec((tr, l_out), lambda i: (i, 0)),
        compiler_params=pltpu.CompilerParams(
            dimension_semantics=("parallel",),   # shares rows across v7x TCs
            vmem_limit_bytes=32 * 1024 * 1024,   # explicit, safe on all gens
        ),
        cost_estimate=pl.CostEstimate(
            flops=0,
            transcendentals=0,
            bytes_accessed=rows * (l_in + l_out) * dtype_bytes,
        ),
    )(x2d)


# ---------------------------------------------------------------------------
# Public wrapper
# ---------------------------------------------------------------------------
@functools.partial(jax.jit, static_argnames=("chomp_size", "impl"))
def chomp1d(x, chomp_size, impl="dma"):
    """Pallas equivalent of Chomp1d: x[:, :, :-chomp_size].contiguous().

    Args:
      x: (B, C, L) array.
      chomp_size: static int, 0 < chomp_size < L.
      impl: "dma" (HBM->HBM strided DMA) or "tiled" (VMEM-staged row tiles).

    Returns:
      (B, C, L - chomp_size) array.
    """
    B, C, L = x.shape
    assert 0 < chomp_size < L, "chomp_size must be in (0, L)"
    l_out = L - chomp_size
    rows = B * C

    # Collapse batch x channels onto sublanes; time stays on lanes.
    # (Contiguous reshape: a layout no-op.)
    x2d = x.reshape(rows, L)

    if impl == "dma":
        out2d = _chomp1d_dma(x2d, l_out)
    else:
        out2d = _chomp1d_tiled(x2d, l_out)

    return out2d.reshape(B, C, l_out)


# ---------------------------------------------------------------------------
if __name__ == "__main__":
    key = jax.random.PRNGKey(0)

    # Small NCW shapes consistent with a TCN-style Chomp1d usage.
    B, C, L = 2, 4, 16
    CHOMP = 2  # e.g. (kernel_size - 1) * dilation padding being chomped off

    x = jax.random.normal(key, (B, C, L), jnp.float32)
    ref = x[:, :, :-CHOMP]  # pure-JAX reference, identical to the PyTorch op

    # Primary path: zero-compute HBM->HBM strided DMA.
    out = None
    try:
        out = jax.block_until_ready(chomp1d(x, CHOMP, impl="dma"))
    except Exception:
        # TODO(synk): drop this fallback once minor-dim-strided HBM->HBM DMA is
        # confirmed to lower on every deployed Mosaic/TPU generation.
        out = None
    if out is None:
        out = jax.block_until_ready(chomp1d(x, CHOMP, impl="tiled"))

    assert out.shape == (B, C, L - CHOMP), out.shape
    assert jnp.array_equal(out, ref), float(jnp.max(jnp.abs(out - ref)))

    # Also validate the tiled (VMEM-staged) variant explicitly.
    out_t = jax.block_until_ready(chomp1d(x, CHOMP, impl="tiled"))
    assert out_t.shape == (B, C, L - CHOMP), out_t.shape
    assert jnp.array_equal(out_t, ref), float(jnp.max(jnp.abs(out_t - ref)))

    print("KERNEL_OK")
</pallas_src>

<mosaic_0001>
module attributes {stable_mosaic.version = 11 : i64} {
  func.func @_chomp1d_dma_kernel(%arg0: memref<8x16xf32, #tpu.memory_space<any>>, %arg1: memref<8x14xf32, #tpu.memory_space<any>>, %arg2: memref<!tpu.dma_semaphore, #tpu.memory_space<semaphore_mem>>) attributes {dimension_semantics = [], scalar_prefetch = 0 : i64, scratch_operands = 1 : i64, tpu.core_type = #tpu.core_type<tc>} {
    %c0_i32 = arith.constant 0 : i32
    %c0_i32_0 = arith.constant 0 : i32
    %0 = tpu.memref_slice %arg0[%c0_i32, %c0_i32_0] : memref<8x16xf32, #tpu.memory_space<any>> -> memref<8x14xf32, #tpu.memory_space<any>>
    tpu.enqueue_dma source(%0 : memref<8x14xf32, #tpu.memory_space<any>>) target(%arg1 : memref<8x14xf32, #tpu.memory_space<any>>) target_semaphore(%arg2 : memref<!tpu.dma_semaphore, #tpu.memory_space<semaphore_mem>>)
    %c0_i32_1 = arith.constant 0 : i32
    %c0_i32_2 = arith.constant 0 : i32
    %1 = tpu.memref_slice %arg0[%c0_i32_1, %c0_i32_2] : memref<8x16xf32, #tpu.memory_space<any>> -> memref<8x14xf32, #tpu.memory_space<any>>
    tpu.wait_dma2 semaphore(%arg2 : memref<!tpu.dma_semaphore, #tpu.memory_space<semaphore_mem>>) src(%1 : memref<8x14xf32, #tpu.memory_space<any>>) dst(%arg1 : memref<8x14xf32, #tpu.memory_space<any>>)
    return
  }
}

module attributes {stable_mosaic.version = 11 : i64} {
  func.func @_chomp1d_copy_kernel(%arg0: i32, %arg1: memref<8x16xf32, #tpu.memory_space<vmem>>, %arg2: memref<8x14xf32, #tpu.memory_space<vmem>>) attributes {dimension_semantics = [#tpu.dimension_semantics<parallel>], iteration_bounds = array<i64: 1>, scalar_prefetch = 0 : i64, scratch_operands = 0 : i64, tpu.core_type = #tpu.core_type<tc>, window_params = [{transform_indices = @transform_0, window_bounds = array<i64: 8, 16>}, {transform_indices = @transform_1, window_bounds = array<i64: 8, 14>}]} {
    %c0 = arith.constant 0 : index
    %c0_0 = arith.constant 0 : index
    %0 = vector.load %arg1[%c0, %c0_0] : memref<8x16xf32, #tpu.memory_space<vmem>>, vector<8x14xf32>
    %c0_1 = arith.constant 0 : index
    %c0_2 = arith.constant 0 : index
    %1 = vector.load %arg2[%c0_1, %c0_2] : memref<8x14xf32, #tpu.memory_space<vmem>>, vector<8x14xf32>
    tpu.vector_store %arg2[%c0_1, %c0_2], %0 {strides = array<i32>} : memref<8x14xf32, #tpu.memory_space<vmem>>, vector<8x14xf32>,
    return
  }
  func.func @transform_0(%arg0: i32) -> (i32, i32) {
    %c0_i32 = arith.constant 0 : i32
    %c0_i32_0 = arith.constant 0 : i32
    return %arg0, %c0_i32 : i32, i32
  }
  func.func @transform_1(%arg0: i32) -> (i32, i32) {
    %c0_i32 = arith.constant 0 : i32
    %c0_i32_0 = arith.constant 0 : i32
    return %arg0, %c0_i32 : i32, i32
  }
}

</mosaic_0001>

<llo_original>
// kernel: chomp1d.1
$region0: #{chomp1d.1}
  #allocation0 [shape = 'u32[]', space=smem, size = 0x4, offset = 0x4, fixed_abs, tag = 'smem constant byte address 0x4 - core index']
  #allocation1 [shape = 'u32[72,128]{1,0:T(1,128)}', space=vmem, size = 0x9000, scoped, tag = 'internal scratch']
  %s0 = inlined_call_operand.hbm [shape: f32[8,16], index: 0, kind: input, shape index: {}]
  %s1 = inlined_call_operand.hbm [shape: f32[8,14], index: 1, kind: output, shape index: {}]
  %s2 = sld [smem:[#allocation0]]
  $region18: #{chomp1d.1} parent=0
    _
  %s4 = ssub.s32 1, %s2
  %s5 = scalar_select 0, %s4, %s2
  $region1: #{chomp1d.1} parent=0
    #allocation2 [shape = 'u8[4096]{0}', space=vmem, size = 0x1000, scoped, tag = 'input window, operand 0, single buffered']
    #allocation3 [shape = 's32[1]{0}', space=sflag, size = 0x4, scoped, tag = 'scoped memory for chomp1d.1']
    #allocation4 [shape = 's32[1]{0}', space=sflag, size = 0x4, scoped, tag = 'scoped memory for chomp1d.1']
    #allocation5 [shape = 'u8[4096]{0}', space=vmem, size = 0x1000, scoped, tag = 'output window, operand 0, single buffered']
    %6 = vsyncpa [#allocation3], 0
    %7 = vsyncpa [#allocation4], 0
    // Predicated region
    $region2: #{chomp1d.1} parent=1 // pred_check
      _
    $region3: #{chomp1d.1} parent=1 // pred_check_branch
      %9 = sbr.rel (0) target = $region5
    $region4: #{chomp1d.1} parent=1 // pred_region
      %11 = vsyncadd [#allocation3], 0
      %s13 = sshll.u32 %s0, 4
      %s14 = int_to_ptr.hbm [resolvable:$true] %s13
      %s15 = sshll.u32 [#allocation2], 4
      %s16 = int_to_ptr.vmem [resolvable:$true] %s15
      %18 = dma.hbm_to_vmem [thread:$0]  %s14, 128, %s16, [#allocation3]
    $region5: #{chomp1d.1} parent=1 // pred_fallthru
      _
    // Predicated region
    $region6: #{chomp1d.1} parent=1 // pred_check
      _
    $region7: #{chomp1d.1} parent=1 // pred_check_branch
      %20 = sbr.rel (0) target = $region9
    $region8: #{chomp1d.1} parent=1 // pred_region
      %22 = dma.done [#allocation3], 128
    $region9: #{chomp1d.1} parent=1 // pred_fallthru
      _
    %v23 = vld [vmem:[#allocation2] sm:$0xff]
    %vm24 = vcmask 113664
    %25 = vst.msk [vmem:[#allocation5] sm:$0xff] %vm24, %v23
    // Predicated region
    $region10: #{chomp1d.1} parent=1 // pred_check
      _
    $region11: #{chomp1d.1} parent=1 // pred_check_branch
      %27 = sbr.rel (0) target = $region13
    $region12: #{chomp1d.1} parent=1 // pred_region
      %29 = vsyncadd [#allocation4], 0
      %s31 = sshll.u32 [#allocation5], 4
      %s32 = int_to_ptr.vmem [resolvable:$true] %s31
      %s33 = sshll.u32 %s1, 4
      %s34 = int_to_ptr.hbm [resolvable:$true] %s33
      %36 = dma.vmem_to_hbm [thread:$0]  %s32, 128, %s34, [#allocation4]
    $region13: #{chomp1d.1} parent=1 // pred_fallthru
      _
    // Predicated region
    $region14: #{chomp1d.1} parent=1 // pred_check
      _
    $region15: #{chomp1d.1} parent=1 // pred_check_branch
      %38 = sbr.rel (0) target = $region17
    $region16: #{chomp1d.1} parent=1 // pred_region
      %40 = dma.done [#allocation4], 128
    $region17: #{chomp1d.1} parent=1 // pred_fallthru
      _
    %41 = vsyncpa [#allocation3], 1
    %42 = vsyncpa [#allocation4], 1

</llo_original>
